<compile_context>
chip_gen: v7x
topology: tpu7x:2x2x1
jax: 0.10.0
libtpu: 0.0.40
codegen_flags: <defaults>
</compile_context>

<pallas_src>
from functools import partial

import jax
import jax.numpy as jnp
from jax import lax
from jax.experimental import pallas as pl
from jax.experimental.pallas import tpu as pltpu

EPS = 1e-9
TEMP = 0.66
HIDDEN = 256
NEG_BIG = -1e30        # finite "-inf" for padded classes (keeps 0 * pad == 0, no NaN)
STATS_LANES = 128      # lane-dense stats slab


def _decoder_fused_kernel(reps, code_ref, z_ref, lab_ref, tgt_ref,
                          w1_ref, b1_ref, w2_ref, b2_ref,
                          pred_ref, stats_ref, x_scr):
    code = code_ref[pl.program_id(0)]       # branch code: 0=identity 1=**(1/4) 2=**(1/3)
    z = z_ref[...]                          # (tile_m, Dp) f32

    # Branch-selected input transform; pl.when skips the unused EUP paths entirely.
    @pl.when(code == 0)
    def _():
        x_scr[...] = z                                        # identity, bit-exact

    @pl.when(code == 1)
    def _():
        x_scr[...] = jnp.sqrt(jnp.sqrt(z + EPS))              # (z+EPS)**(1/4)

    @pl.when(code == 2)
    def _():
        x_scr[...] = jnp.exp(jnp.log(z + EPS) * (1.0 / 3.0))  # (z+EPS)**(1/3)

    x = x_scr[...]

    # dec_hidden: Linear(zdim -> 256) + ReLU   (bf16 MXU operands, f32 accumulation)
    h = jnp.dot(x.astype(jnp.bfloat16), w1_ref[...],
                preferred_element_type=jnp.float32) + b1_ref[...]
    h = jnp.maximum(h, 0.0)

    # dec_label: Linear(256 -> zdim), then log_softmax(logits + EPS)
    logits = jnp.dot(h.astype(jnp.bfloat16), w2_ref[...],
                     preferred_element_type=jnp.float32) + b2_ref[...]
    logits = logits + EPS                   # padded lanes stay ~NEG_BIG
    m = jnp.max(logits, axis=-1, keepdims=True)
    lse = jnp.log(jnp.sum(jnp.exp(logits - m), axis=-1, keepdims=True)) + m
    logp = logits - lse
    pred_ref[...] = logp                    # lane-dense (128-wide) store

    tile_m, dp = logp.shape
    bsz = lab_ref.shape[0]

    # p.loss('label_...'): -(target * log_pred).sum(-1) on a free (reps, B, Dp) view
    # (B=8 sublanes, Dp=128 lanes -> reshape crosses no (8,128) tile boundary).
    logp3 = logp.reshape(reps, bsz, dp)
    lab = lab_ref[...]                                        # (B, Dp), padded lanes 0
    loss3 = -jnp.sum(lab[None] * logp3, axis=-1, keepdims=True)   # (reps, B, 1)

    # p.loss('acc_label_...'): argmax(log_softmax(x)) == argmax(x) -> reuse m;
    # target argmax is precomputed in the wrapper (tgt_ref), no in-kernel label reduce.
    iota = lax.broadcasted_iota(jnp.int32, logits.shape, 1)
    pred_idx = jnp.min(jnp.where(logits == m, iota, dp),
                       axis=-1, keepdims=True).astype(jnp.float32)    # (tile_m, 1)
    acc3 = (pred_idx.reshape(reps, bsz, 1) != tgt_ref[...][None]).astype(jnp.float32)

    # lane-dense stats store: lane 0 = label loss, lane 1 = acc error, rest 0
    col = lax.broadcasted_iota(jnp.int32, (reps, bsz, STATS_LANES), 2)
    stats3 = jnp.where(col == 0, loss3, jnp.where(col == 1, acc3, 0.0))
    stats_ref[...] = stats3.reshape(reps * bsz, STATS_LANES)


def _branch_code(shared_from):
    if 'poe' in shared_from:
        return 2 if 'partial' in shared_from else 1
    return 0


def _branch_power(shared_from):
    if 'poe' in shared_from:
        return (1.0 / 3.0) if 'partial' in shared_from else 0.25
    return 0.0


def prepare_params(params, zdim):
    """One-time prep (constant across calls): pad class axis to 128 lanes and
    pre-cast the matmul weights to bf16 (MXU operands); biases stay f32."""
    w1, b1, w2, b2 = params
    dp = max(128, ((zdim + 127) // 128) * 128)
    f32 = jnp.float32
    w1_p = jnp.pad(w1.astype(f32), ((0, dp - zdim), (0, 0))).astype(jnp.bfloat16)
    b1_p = b1.reshape(1, HIDDEN).astype(f32)
    w2_p = jnp.pad(w2.astype(f32), ((0, 0), (0, dp - zdim))).astype(jnp.bfloat16)
    b2_p = jnp.concatenate(
        [b2.reshape(1, zdim).astype(f32),
         jnp.full((1, dp - zdim), NEG_BIG, f32)], axis=1)
    return w1_p, b1_p, w2_p, b2_p


@jax.jit
def decoder_c_fused(z_by_key, labels, prep):
    """All 'shared' branches of DecoderC.forward in a single pallas_call.

    z_by_key: {shared_from: (S, B, D) concrete-sampled latent}
    labels:   (B, D) one-hot targets
    prep:     prepare_params(...) output (padded / bf16-cast weights)
    returns   {shared_from: (pred (S,B,D), label_loss (S,B), acc_err (S,B))}
    """
    keys = list(z_by_key.keys())
    S, B, D = z_by_key[keys[0]].shape
    nb = len(keys)
    tile_m = S * B                  # one branch per grid step
    R = nb * tile_m
    Dp = max(128, ((D + 127) // 128) * 128)
    assert tile_m % 8 == 0 and B % 8 == 0, "row tile / batch must be sublane-aligned"
    w1_p, b1_p, w2_p, b2_p = prep
    f32 = jnp.float32

    # rows = (branch, sample, batch); all prep below is fused inside this jit
    z_all = jnp.concatenate(
        [z_by_key[k].reshape(tile_m, D) for k in keys], axis=0).astype(f32)
    z_all = jnp.pad(z_all, ((0, 0), (0, Dp - D)))                 # (R, Dp)
    codes = jnp.asarray([_branch_code(k) for k in keys], jnp.int32)   # (nb,) -> SMEM

    lab_p = jnp.pad(labels.astype(f32), ((0, 0), (0, Dp - D)))    # (B, Dp), resident
    tgt = jnp.argmax(labels, axis=-1).astype(f32).reshape(B, 1)   # (B, 1), resident

    kernel = partial(_decoder_fused_kernel, S)                    # reps == num samples

    pred_pad, stats = pl.pallas_call(
        kernel,
        out_shape=(jax.ShapeDtypeStruct((R, Dp), f32),
                   jax.ShapeDtypeStruct((R, STATS_LANES), f32)),
        grid_spec=pltpu.PrefetchScalarGridSpec(
            num_scalar_prefetch=1,          # branch codes -> SMEM
            grid=(nb,),                     # one grid step per branch
            in_specs=[
                pl.BlockSpec((tile_m, Dp), lambda b, c: (b, 0)),     # z rows (branch b)
                pl.BlockSpec((B, Dp),      lambda b, c: (0, 0)),     # labels (resident)
                pl.BlockSpec((B, 1),       lambda b, c: (0, 0)),     # argmax(labels)
                pl.BlockSpec((Dp, HIDDEN), lambda b, c: (0, 0)),     # W1 bf16 (resident)
                pl.BlockSpec((1, HIDDEN),  lambda b, c: (0, 0)),     # b1
                pl.BlockSpec((HIDDEN, Dp), lambda b, c: (0, 0)),     # W2 bf16 (resident)
                pl.BlockSpec((1, Dp),      lambda b, c: (0, 0)),     # b2 (NEG_BIG pad)
            ],
            out_specs=(
                pl.BlockSpec((tile_m, Dp), lambda b, c: (b, 0)),          # log-softmax
                pl.BlockSpec((tile_m, STATS_LANES), lambda b, c: (b, 0)),  # [loss, acc]
            ),
            scratch_shapes=[pltpu.VMEM((tile_m, Dp), f32)],
        ),
        compiler_params=pltpu.CompilerParams(
            dimension_semantics=("parallel",)),    # shards branches across v7x TCs
    )(codes, z_all, lab_p, tgt, w1_p, b1_p, w2_p, b2_p)

    # output slicing stays inside the same jit (no extra dispatches)
    pred = pred_pad[:, :D].reshape(nb, S, B, D)
    loss = stats[:, 0].reshape(nb, S, B)
    acc = stats[:, 1].reshape(nb, S, B)
    return {k: (pred[j], loss[j], acc[j]) for j, k in enumerate(keys)}


def decoder_c_forward(z_by_key, labels, prep, acc=True):
    """Mirrors DecoderC.forward over {shared_from: sampled latent}, ONE kernel launch.

    Note: like the PyTorch module, 'poe_partial' results are stored under the
    name 'poe', so if both keys are present the later one overwrites.
    """
    raw = decoder_c_fused(z_by_key, labels, prep)
    p = {}
    for shared_from, (pred, loss, acc_err) in raw.items():
        name = 'poe' if ('poe' in shared_from and 'partial' in shared_from) else shared_from
        p['label_' + name] = loss
        p['pred_label_' + name] = pred
        if acc:
            p['acc_label_' + name] = acc_err
    return p


def init_params(seed, zdim):
    """Deterministic kaiming-style init for dec_hidden / dec_label."""
    k1, k2 = jax.random.split(jax.random.PRNGKey(seed))
    w1 = jax.random.normal(k1, (zdim, HIDDEN), jnp.float32) * jnp.sqrt(2.0 / zdim)
    b1 = jnp.zeros((HIDDEN,), jnp.float32)
    w2 = jax.random.normal(k2, (HIDDEN, zdim), jnp.float32) * jnp.sqrt(2.0 / HIDDEN)
    b2 = jnp.zeros((zdim,), jnp.float32)
    return w1, b1, w2, b2


def _reference_branch(z, labels, params, power):
    """Pure-JAX reference at true f32 matmul precision (module semantics)."""
    w1, b1, w2, b2 = params
    hi = jax.lax.Precision.HIGHEST
    x = z if power == 0.0 else (z + EPS) ** power
    h = jnp.maximum(jnp.dot(x, w1, precision=hi) + b1, 0.0)
    logits = jnp.dot(h, w2, precision=hi) + b2 + EPS
    logp = jax.nn.log_softmax(logits, axis=-1)
    loss = -(labels[None] * logp).sum(-1)
    acc_err = 1.0 - (jnp.argmax(logp, -1) == jnp.argmax(labels, -1)[None]).astype(jnp.float32)
    return logp, loss, acc_err


if __name__ == "__main__":
    seed = 0
    S, B, D = 2, 8, 10          # num_samples, batch, zSharedLabel_dim

    key = jax.random.PRNGKey(0)
    k_z1, k_z2, k_z3, k_lab = jax.random.split(key, 4)

    def concrete_like_sample(k):
        # stand-in for the Gumbel-softmax (Concrete) sample q[...] at TEMP
        g = -jnp.log(-jnp.log(jax.random.uniform(k, (S, B, D)) + 1e-20) + 1e-20)
        return jax.nn.softmax(g / TEMP, axis=-1)

    z_by_key = {
        'own':         concrete_like_sample(k_z1),
        'poe':         concrete_like_sample(k_z2),
        'poe_partial': concrete_like_sample(k_z3),
    }
    labels = jax.nn.one_hot(
        jax.random.randint(k_lab, (B,), 0, D), D, dtype=jnp.float32)
    params = init_params(seed, D)
    prep = prepare_params(params, D)        # one-time constant prep (padded / bf16)

    # single fused, jitted kernel launch covering all three branches
    raw = jax.block_until_ready(decoder_c_fused(z_by_key, labels, prep))
    # module-faithful output dict (the 'poe_partial' branch is renamed to 'poe')
    p = jax.block_until_ready(decoder_c_forward(z_by_key, labels, prep, acc=True))

    ok = True
    for name in ('own', 'poe', 'poe_partial'):
        pred, loss, acc_err = raw[name]
        ref_logp, ref_loss, ref_acc = _reference_branch(
            z_by_key[name], labels, params, _branch_power(name))
        # tolerance accommodates bf16 MXU operands (f32 accumulation)
        ok &= bool(jnp.allclose(pred, ref_logp, atol=2e-2, rtol=2e-2))
        ok &= bool(jnp.allclose(loss, ref_loss, atol=2e-2, rtol=2e-2))
        # acc-error must agree exactly with argmax of the kernel's own predictions
        own_acc = 1.0 - (jnp.argmax(pred, -1) ==
                         jnp.argmax(labels, -1)[None]).astype(jnp.float32)
        ok &= bool(jnp.array_equal(acc_err, own_acc))

    ok &= set(p.keys()) == {'label_own', 'pred_label_own', 'acc_label_own',
                            'label_poe', 'pred_label_poe', 'acc_label_poe'}

    print("KERNEL_OK" if ok else "MISMATCH")
</pallas_src>

<mosaic_0001>
module attributes {stable_mosaic.version = 11 : i64} {
  func.func @_decoder_fused_kernel(%arg0: i32, %arg1: memref<3xi32, #tpu.memory_space<smem>>, %arg2: memref<16x128xf32, #tpu.memory_space<vmem>>, %arg3: memref<8x128xf32, #tpu.memory_space<vmem>>, %arg4: memref<8x1xf32, #tpu.memory_space<vmem>>, %arg5: memref<128x256xbf16, #tpu.memory_space<vmem>>, %arg6: memref<1x256xf32, #tpu.memory_space<vmem>>, %arg7: memref<256x128xbf16, #tpu.memory_space<vmem>>, %arg8: memref<1x128xf32, #tpu.memory_space<vmem>>, %arg9: memref<16x128xf32, #tpu.memory_space<vmem>>, %arg10: memref<16x128xf32, #tpu.memory_space<vmem>>, %arg11: memref<16x128xf32, #tpu.memory_space<vmem>>) attributes {dimension_semantics = [#tpu.dimension_semantics<parallel>], iteration_bounds = array<i64: 3>, scalar_prefetch = 1 : i64, scratch_operands = 1 : i64, tpu.core_type = #tpu.core_type<tc>, window_params = [{transform_indices = @transform_0, window_bounds = array<i64: 16, 128>}, {pipeline_mode = #tpu.pipeline_mode<synchronous>, transform_indices = @transform_1, window_bounds = array<i64: 8, 128>}, {pipeline_mode = #tpu.pipeline_mode<synchronous>, transform_indices = @transform_2, window_bounds = array<i64: 8, 1>}, {pipeline_mode = #tpu.pipeline_mode<synchronous>, transform_indices = @transform_3, window_bounds = array<i64: 128, 256>}, {pipeline_mode = #tpu.pipeline_mode<synchronous>, transform_indices = @transform_4, window_bounds = array<i64: 1, 256>}, {pipeline_mode = #tpu.pipeline_mode<synchronous>, transform_indices = @transform_5, window_bounds = array<i64: 256, 128>}, {pipeline_mode = #tpu.pipeline_mode<synchronous>, transform_indices = @transform_6, window_bounds = array<i64: 1, 128>}, {transform_indices = @transform_7, window_bounds = array<i64: 16, 128>}, {transform_indices = @transform_8, window_bounds = array<i64: 16, 128>}]} {
    %0 = arith.index_cast %arg0 : i32 to index
    %1 = memref.load %arg1[%0] : memref<3xi32, #tpu.memory_space<smem>>
    %c0 = arith.constant 0 : index
    %c0_0 = arith.constant 0 : index
    %2 = vector.load %arg2[%c0, %c0_0] : memref<16x128xf32, #tpu.memory_space<vmem>>, vector<16x128xf32>
    %c0_i32 = arith.constant 0 : i32
    %3 = arith.cmpi eq, %1, %c0_i32 : i32
    %4 = arith.extui %3 : i1 to i32
    %c0_i32_1 = arith.constant 0 : i32
    %5 = arith.cmpi ne, %4, %c0_i32_1 : i32
    scf.if %5 {
      %c0_33 = arith.constant 0 : index
      %c0_34 = arith.constant 0 : index
      %79 = vector.load %arg11[%c0_33, %c0_34] : memref<16x128xf32, #tpu.memory_space<vmem>>, vector<16x128xf32>
      tpu.vector_store %arg11[%c0_33, %c0_34], %2 {strides = array<i32>} : memref<16x128xf32, #tpu.memory_space<vmem>>, vector<16x128xf32>,
    } else {
    }
    %c1_i32 = arith.constant 1 : i32
    %6 = arith.cmpi eq, %1, %c1_i32 : i32
    %7 = arith.extui %6 : i1 to i32
    %c0_i32_2 = arith.constant 0 : i32
    %8 = arith.cmpi ne, %7, %c0_i32_2 : i32
    scf.if %8 {
      %cst_33 = arith.constant 9.99999971E-10 : f32
      %79 = vector.broadcast %cst_33 : f32 to vector<16x128xf32>
      %80 = arith.addf %2, %79 : vector<16x128xf32>
      %81 = math.sqrt %80 : vector<16x128xf32>
      %82 = math.sqrt %81 : vector<16x128xf32>
      %c0_34 = arith.constant 0 : index
      %c0_35 = arith.constant 0 : index
      %83 = vector.load %arg11[%c0_34, %c0_35] : memref<16x128xf32, #tpu.memory_space<vmem>>, vector<16x128xf32>
      tpu.vector_store %arg11[%c0_34, %c0_35], %82 {strides = array<i32>} : memref<16x128xf32, #tpu.memory_space<vmem>>, vector<16x128xf32>,
    } else {
    }
    %c2_i32 = arith.constant 2 : i32
    %9 = arith.cmpi eq, %1, %c2_i32 : i32
    %10 = arith.extui %9 : i1 to i32
    %c0_i32_3 = arith.constant 0 : i32
    %11 = arith.cmpi ne, %10, %c0_i32_3 : i32
    scf.if %11 {
      %cst_33 = arith.constant 9.99999971E-10 : f32
      %79 = vector.broadcast %cst_33 : f32 to vector<16x128xf32>
      %80 = arith.addf %2, %79 : vector<16x128xf32>
      %81 = math.log %80 : vector<16x128xf32>
      %cst_34 = arith.constant 0.333333343 : f32
      %82 = vector.broadcast %cst_34 : f32 to vector<16x128xf32>
      %83 = arith.mulf %81, %82 : vector<16x128xf32>
      %84 = math.exp %83 : vector<16x128xf32>
      %c0_35 = arith.constant 0 : index
      %c0_36 = arith.constant 0 : index
      %85 = vector.load %arg11[%c0_35, %c0_36] : memref<16x128xf32, #tpu.memory_space<vmem>>, vector<16x128xf32>
      tpu.vector_store %arg11[%c0_35, %c0_36], %84 {strides = array<i32>} : memref<16x128xf32, #tpu.memory_space<vmem>>, vector<16x128xf32>,
    } else {
    }
    %c0_4 = arith.constant 0 : index
    %c0_5 = arith.constant 0 : index
    %12 = vector.load %arg11[%c0_4, %c0_5] : memref<16x128xf32, #tpu.memory_space<vmem>>, vector<16x128xf32>
    %13 = arith.truncf %12 : vector<16x128xf32> to vector<16x128xbf16>
    %c0_6 = arith.constant 0 : index
    %c0_7 = arith.constant 0 : index
    %14 = vector.load %arg5[%c0_6, %c0_7] : memref<128x256xbf16, #tpu.memory_space<vmem>>, vector<128x256xbf16>
    %cst = arith.constant dense<0.000000e+00> : vector<16x256xf32>
    %15 = tpu.matmul %13, %14, %cst {dimension_numbers = #tpu.dot_dimension_numbers<[1], [0], [0], [1], [0, 0, 1, 1], [], []>} : vector<16x128xbf16>, vector<128x256xbf16>, vector<16x256xf32> -> vector<16x256xf32>
    %c0_8 = arith.constant 0 : index
    %c0_9 = arith.constant 0 : index
    %16 = vector.load %arg6[%c0_8, %c0_9] : memref<1x256xf32, #tpu.memory_space<vmem>>, vector<1x256xf32>
    %17 = vector.broadcast %16 : vector<1x256xf32> to vector<16x256xf32>
    %18 = arith.addf %15, %17 : vector<16x256xf32>
    %cst_10 = arith.constant 0.000000e+00 : f32
    %19 = vector.broadcast %cst_10 : f32 to vector<16x256xf32>
    %20 = arith.maximumf %18, %19 : vector<16x256xf32>
    %21 = arith.truncf %20 : vector<16x256xf32> to vector<16x256xbf16>
    %c0_11 = arith.constant 0 : index
    %c0_12 = arith.constant 0 : index
    %22 = vector.load %arg7[%c0_11, %c0_12] : memref<256x128xbf16, #tpu.memory_space<vmem>>, vector<256x128xbf16>
    %cst_13 = arith.constant dense<0.000000e+00> : vector<16x128xf32>
    %23 = tpu.matmul %21, %22, %cst_13 {dimension_numbers = #tpu.dot_dimension_numbers<[1], [0], [0], [1], [0, 0, 1, 1], [], []>} : vector<16x256xbf16>, vector<256x128xbf16>, vector<16x128xf32> -> vector<16x128xf32>
    %c0_14 = arith.constant 0 : index
    %c0_15 = arith.constant 0 : index
    %24 = vector.load %arg8[%c0_14, %c0_15] : memref<1x128xf32, #tpu.memory_space<vmem>>, vector<1x128xf32>
    %25 = vector.broadcast %24 : vector<1x128xf32> to vector<16x128xf32>
    %26 = arith.addf %23, %25 : vector<16x128xf32>
    %cst_16 = arith.constant 9.99999971E-10 : f32
    %27 = vector.broadcast %cst_16 : f32 to vector<16x128xf32>
    %28 = arith.addf %26, %27 : vector<16x128xf32>
    %cst_17 = arith.constant dense<0xFF800000> : vector<16xf32>
    %29 = vector.multi_reduction <maximumf>, %28, %cst_17 [1] : vector<16x128xf32> to vector<16xf32>
    %30 = vector.shape_cast %29 : vector<16xf32> to vector<16x1xf32>
    %31 = vector.broadcast %30 : vector<16x1xf32> to vector<16x128xf32>
    %32 = arith.subf %28, %31 : vector<16x128xf32>
    %33 = math.exp %32 : vector<16x128xf32>
    %cst_18 = arith.constant dense<0.000000e+00> : vector<16xf32>
    %34 = vector.multi_reduction <add>, %33, %cst_18 [1] : vector<16x128xf32> to vector<16xf32>
    %35 = vector.shape_cast %34 : vector<16xf32> to vector<16x1xf32>
    %36 = math.log %35 : vector<16x1xf32>
    %37 = arith.addf %36, %30 : vector<16x1xf32>
    %38 = vector.broadcast %37 : vector<16x1xf32> to vector<16x128xf32>
    %39 = arith.subf %28, %38 : vector<16x128xf32>
    %c0_19 = arith.constant 0 : index
    %c0_20 = arith.constant 0 : index
    %40 = vector.load %arg9[%c0_19, %c0_20] : memref<16x128xf32, #tpu.memory_space<vmem>>, vector<16x128xf32>
    tpu.vector_store %arg9[%c0_19, %c0_20], %39 {strides = array<i32>} : memref<16x128xf32, #tpu.memory_space<vmem>>, vector<16x128xf32>,
    %41 = vector.shape_cast %39 : vector<16x128xf32> to vector<2x8x128xf32>
    %c0_21 = arith.constant 0 : index
    %c0_22 = arith.constant 0 : index
    %42 = vector.load %arg3[%c0_21, %c0_22] : memref<8x128xf32, #tpu.memory_space<vmem>>, vector<8x128xf32>
    %43 = vector.shape_cast %42 : vector<8x128xf32> to vector<1x8x128xf32>
    %44 = vector.broadcast %43 : vector<1x8x128xf32> to vector<2x8x128xf32>
    %45 = arith.mulf %44, %41 : vector<2x8x128xf32>
    %cst_23 = arith.constant dense<0.000000e+00> : vector<2x8xf32>
    %46 = vector.multi_reduction <add>, %45, %cst_23 [2] : vector<2x8x128xf32> to vector<2x8xf32>
    %47 = vector.shape_cast %46 : vector<2x8xf32> to vector<2x8x1xf32>
    %cst_24 = arith.constant 0.000000e+00 : f32
    %48 = vector.broadcast %cst_24 : f32 to vector<2x8x1xf32>
    %49 = arith.subf %48, %47 : vector<2x8x1xf32>
    %50 = tpu.iota {dimensions = array<i32: 1>} : vector<16x128xi32>
    %51 = vector.broadcast %30 : vector<16x1xf32> to vector<16x128xf32>
    %52 = arith.cmpf oeq, %28, %51 : vector<16x128xf32>
    %c128_i32 = arith.constant 128 : i32
    %53 = vector.broadcast %c128_i32 : i32 to vector<16x128xi32>
    %54 = arith.select %52, %50, %53 : vector<16x128xi1>, vector<16x128xi32>
    %cst_25 = arith.constant dense<2147483647> : vector<16xi32>
    %55 = vector.multi_reduction <minsi>, %54, %cst_25 [1] : vector<16x128xi32> to vector<16xi32>
    %56 = vector.shape_cast %55 : vector<16xi32> to vector<16x1xi32>
    %57 = arith.sitofp %56 : vector<16x1xi32> to vector<16x1xf32>
    %58 = vector.shape_cast %57 : vector<16x1xf32> to vector<2x8x1xf32>
    %c0_26 = arith.constant 0 : index
    %c0_27 = arith.constant 0 : index
    %59 = vector.load %arg4[%c0_26, %c0_27] : memref<8x1xf32, #tpu.memory_space<vmem>>, vector<8x1xf32>
    %60 = vector.shape_cast %59 : vector<8x1xf32> to vector<1x8x1xf32>
    %61 = vector.broadcast %60 : vector<1x8x1xf32> to vector<2x8x1xf32>
    %62 = arith.cmpf one, %58, %61 : vector<2x8x1xf32>
    %63 = arith.extui %62 : vector<2x8x1xi1> to vector<2x8x1xi32>
    %64 = arith.sitofp %63 : vector<2x8x1xi32> to vector<2x8x1xf32>
    %65 = tpu.iota {dimensions = array<i32: 2>} : vector<2x8x128xi32>
    %c0_i32_28 = arith.constant 0 : i32
    %66 = vector.broadcast %c0_i32_28 : i32 to vector<2x8x128xi32>
    %67 = arith.cmpi eq, %65, %66 : vector<2x8x128xi32>
    %c1_i32_29 = arith.constant 1 : i32
    %68 = vector.broadcast %c1_i32_29 : i32 to vector<2x8x128xi32>
    %69 = arith.cmpi eq, %65, %68 : vector<2x8x128xi32>
    %cst_30 = arith.constant 0.000000e+00 : f32
    %70 = vector.shape_cast %64 : vector<2x8x1xf32> to vector<2x8x1xf32>
    %71 = vector.broadcast %70 : vector<2x8x1xf32> to vector<2x8x128xf32>
    %72 = vector.broadcast %cst_30 : f32 to vector<2x8x128xf32>
    %73 = arith.select %69, %71, %72 : vector<2x8x128xi1>, vector<2x8x128xf32>
    %74 = vector.shape_cast %49 : vector<2x8x1xf32> to vector<2x8x1xf32>
    %75 = vector.broadcast %74 : vector<2x8x1xf32> to vector<2x8x128xf32>
    %76 = arith.select %67, %75, %73 : vector<2x8x128xi1>, vector<2x8x128xf32>
    %77 = vector.shape_cast %76 : vector<2x8x128xf32> to vector<16x128xf32>
    %c0_31 = arith.constant 0 : index
    %c0_32 = arith.constant 0 : index
    %78 = vector.load %arg10[%c0_31, %c0_32] : memref<16x128xf32, #tpu.memory_space<vmem>>, vector<16x128xf32>
    tpu.vector_store %arg10[%c0_31, %c0_32], %77 {strides = array<i32>} : memref<16x128xf32, #tpu.memory_space<vmem>>, vector<16x128xf32>,
    return
  }
  func.func @transform_0(%arg0: i32, %arg1: memref<3xi32, #tpu.memory_space<smem>>) -> (i32, i32) {
    %c0_i32 = arith.constant 0 : i32
    %c0_i32_0 = arith.constant 0 : i32
    return %arg0, %c0_i32 : i32, i32
  }
  func.func @transform_1(%arg0: i32, %arg1: memref<3xi32, #tpu.memory_space<smem>>) -> (i32, i32) {
    %c0_i32 = arith.constant 0 : i32
    %c0_i32_0 = arith.constant 0 : i32
    %c0_i32_1 = arith.constant 0 : i32
    return %c0_i32, %c0_i32_0 : i32, i32
  }
  func.func @transform_2(%arg0: i32, %arg1: memref<3xi32, #tpu.memory_space<smem>>) -> (i32, i32) {
    %c0_i32 = arith.constant 0 : i32
    %c0_i32_0 = arith.constant 0 : i32
    %c0_i32_1 = arith.constant 0 : i32
    return %c0_i32, %c0_i32_0 : i32, i32
  }
  func.func @transform_3(%arg0: i32, %arg1: memref<3xi32, #tpu.memory_space<smem>>) -> (i32, i32) {
    %c0_i32 = arith.constant 0 : i32
    %c0_i32_0 = arith.constant 0 : i32
    %c0_i32_1 = arith.constant 0 : i32
    return %c0_i32, %c0_i32_0 : i32, i32
  }
  func.func @transform_4(%arg0: i32, %arg1: memref<3xi32, #tpu.memory_space<smem>>) -> (i32, i32) {
    %c0_i32 = arith.constant 0 : i32
    %c0_i32_0 = arith.constant 0 : i32
    %c0_i32_1 = arith.constant 0 : i32
    return %c0_i32, %c0_i32_0 : i32, i32
  }
  func.func @transform_5(%arg0: i32, %arg1: memref<3xi32, #tpu.memory_space<smem>>) -> (i32, i32) {
    %c0_i32 = arith.constant 0 : i32
    %c0_i32_0 = arith.constant 0 : i32
    %c0_i32_1 = arith.constant 0 : i32
    return %c0_i32, %c0_i32_0 : i32, i32
  }
  func.func @transform_6(%arg0: i32, %arg1: memref<3xi32, #tpu.memory_space<smem>>) -> (i32, i32) {
    %c0_i32 = arith.constant 0 : i32
    %c0_i32_0 = arith.constant 0 : i32
    %c0_i32_1 = arith.constant 0 : i32
    return %c0_i32, %c0_i32_0 : i32, i32
  }
  func.func @transform_7(%arg0: i32, %arg1: memref<3xi32, #tpu.memory_space<smem>>) -> (i32, i32) {
    %c0_i32 = arith.constant 0 : i32
    %c0_i32_0 = arith.constant 0 : i32
    return %arg0, %c0_i32 : i32, i32
  }
  func.func @transform_8(%arg0: i32, %arg1: memref<3xi32, #tpu.memory_space<smem>>) -> (i32, i32) {
    %c0_i32 = arith.constant 0 : i32
    %c0_i32_0 = arith.constant 0 : i32
    return %arg0, %c0_i32 : i32, i32
  }
}

</mosaic_0001>

<llo_original>
// kernel: squeeze.12
$region0: #{squeeze.12}
  %s0 = inlined_call_operand.vmem [shape: f32[48], index: 0, kind: input, shape index: {}]
  %s1 = inlined_call_operand.vmem [shape: f32[3,2,8], index: 1, kind: output, shape index: {}]
  $region1: #{squeeze.12} parent=0
    #allocation0 [shape = 'u8[12288]{0}', space=vmem, size = 0x3000, scoped, tag = 'scoped mem for output reshape']
    #allocation1 [shape = 'u8[4096]{0}', space=vmem, size = 0x1000, scoped, tag = 'scoped mem for input reshape']
    %s3 = sshllo.u32 0, 1
    %v4 = vld [vmem:[%s0] sm:%s3]
    %5 = vst [vmem:[#allocation1] sm:%s3] %v4
    %v6 = vld [vmem:[#allocation1] sm:$0x1]
    %vm7 = vcmask 64512
    %8 = vst.msk [vmem:[#allocation0] sm:$0x1] %vm7, %v6
    %v9 = vld [vmem:[#allocation1] sm:$0x1]
    %10 = vrot.lane.b32.xlu0 %v9, 120
    %v11 = vpop.permute.xlu0 %10
    %vm12 = vcmask 64512
    %s13 = scalar_lea.vmem [#allocation0], 1
    %14 = vst.msk [vmem:[%s13] sm:$0x1] %vm12, %v11
    %v15 = vld [vmem:[#allocation1] sm:$0x1]
    %16 = vrot.lane.b32.xlu0 %v15, 112
    %v17 = vpop.permute.xlu0 %16
    %vm18 = vcmask 64512
    %s19 = scalar_lea.vmem [#allocation0], 8
    %20 = vst.msk [vmem:[%s19] sm:$0x1] %vm18, %v17
    %v21 = vld [vmem:[#allocation1] sm:$0x1]
    %22 = vrot.lane.b32.xlu0 %v21, 104
    %v23 = vpop.permute.xlu0 %22
    %vm24 = vcmask 64512
    %s25 = scalar_lea.vmem [#allocation0], 9
    %26 = vst.msk [vmem:[%s25] sm:$0x1] %vm24, %v23
    %v27 = vld [vmem:[#allocation1] sm:$0x1]
    %28 = vrot.lane.b32.xlu0 %v27, 96
    %v29 = vpop.permute.xlu0 %28
    %vm30 = vcmask 64512
    %s31 = scalar_lea.vmem [#allocation0], 16
    %32 = vst.msk [vmem:[%s31] sm:$0x1] %vm30, %v29
    %v33 = vld [vmem:[#allocation1] sm:$0x1]
    %34 = vrot.lane.b32.xlu0 %v33, 88
    %v35 = vpop.permute.xlu0 %34
    %vm36 = vcmask 64512
    %s37 = scalar_lea.vmem [#allocation0], 17
    %38 = vst.msk [vmem:[%s37] sm:$0x1] %vm36, %v35
    %s40 = sshllo.u32 0, 2
    %v42 = vld [vmem:[#allocation0] sm:%s40]
    %s43 = sshllo.u32 0, 2
    %44 = vst [vmem:[%s1] sm:%s43] %v42
    %s45 = scalar_lea.vmem [#allocation0], 8
    %v46 = vld [vmem:[%s45] sm:%s40]
    %s47 = sshllo.u32 0, 2
    %s48 = scalar_lea.vmem %s1, 2
    %49 = vst [vmem:[%s48] sm:%s47] %v46
    %s50 = scalar_lea.vmem [#allocation0], 16
    %v51 = vld [vmem:[%s50] sm:%s40]
    %s52 = sshllo.u32 0, 2
    %s53 = smul.addr 2, 2
    %s54 = scalar_lea.vmem %s1, %s53
    %55 = vst [vmem:[%s54] sm:%s52] %v51

// kernel: squeeze.15
$region0: #{squeeze.15}
  %s0 = inlined_call_operand.vmem [shape: f32[16], index: 0, kind: input, shape index: {}]
  %s1 = inlined_call_operand.hbm [shape: f32[2,8], index: 1, kind: output, shape index: {}]
  $region1: #{squeeze.15} parent=0
    #allocation0 [shape = 'u8[1024]{0}', space=vmem, size = 0x400, scoped, tag = 'operand span for operand 1']
    #allocation1 [shape = 's32[1]{0}', space=sflag, size = 0x4, scoped, tag = 'scoped memory for squeeze.15']
    #allocation2 [shape = 'u8[4096]{0}', space=vmem, size = 0x1000, scoped, tag = 'scoped mem for output reshape']
    #allocation3 [shape = 'u8[4096]{0}', space=vmem, size = 0x1000, scoped, tag = 'scoped mem for input reshape']
    %2 = vsyncpa [#allocation1], 0
    %s4 = sshllo.u32 0, 1
    %v5 = vld [vmem:[%s0] sm:%s4]
    %6 = vst [vmem:[#allocation3] sm:%s4] %v5
    %v7 = vld [vmem:[#allocation3] sm:$0x1]
    %vm8 = vcmask 64512
    %9 = vst.msk [vmem:[#allocation2] sm:$0x1] %vm8, %v7
    %v10 = vld [vmem:[#allocation3] sm:$0x1]
    %11 = vrot.lane.b32.xlu0 %v10, 120
    %v12 = vpop.permute.xlu0 %11
    %vm13 = vcmask 64512
    %s14 = scalar_lea.vmem [#allocation2], 1
    %15 = vst.msk [vmem:[%s14] sm:$0x1] %vm13, %v12
    %s17 = sshllo.u32 0, 2
    %v19 = vld [vmem:[#allocation2] sm:%s17]
    %s20 = sshllo.u32 0, 2
    %21 = vst [vmem:[#allocation0] sm:%s20] %v19
    %s23 = ssub.s32 32, 32
    %24 = vsyncadd [#allocation1], %s23
    %s26 = sshll.u32 [#allocation0], 4
    %s27 = int_to_ptr.vmem [resolvable:$true] %s26
    %29 = dma.vmem_to_hbm [thread:$0]  %s27, 32, %s1, [#allocation1]
    %30 = dma.done [#allocation1], 32
    %31 = vsyncpa [#allocation1], 1

// kernel: decoder_c_fused.1
$region0: #{decoder_c_fused.1}
  #allocation0 [shape = 'u32[]', space=smem, size = 0x4, offset = 0x4, fixed_abs, tag = 'smem constant byte address 0x4 - core index']
  #allocation1 [shape = 'u32[144,128]{1,0:T(1,128)}', space=vmem, size = 0x12000, scoped, tag = 'internal scratch']
  #allocation2 [shape = 'f32[16,128]{1,0:T(8,128)}', space=vmem, size = 0x2000, scoped, tag = 'scratch operand']
  #allocation3 [shape = 's32[1]{0}', space=sflag, size = 0x4, scoped, tag = 'scoped memory for decoder_c_fused.1']
  #allocation4 [shape = 'u8[512]{0}', space=smem, size = 0x200, scoped, tag = 'prefetched SMEM operand 0']
  %s0 = inlined_call_operand.vmem [shape: s32[3], index: 0, kind: input, shape index: {}]
  %s1 = inlined_call_operand.vmem [shape: f32[48,128], index: 1, kind: input, shape index: {}]
  %s2 = inlined_call_operand.vmem [shape: f32[8,128], index: 2, kind: input, shape index: {}]
  %s3 = inlined_call_operand.vmem [shape: f32[8,1], index: 3, kind: input, shape index: {}]
  %s4 = inlined_call_operand.vmem [shape: bf16[128,256], index: 4, kind: input, shape index: {}]
  %s5 = inlined_call_operand.vmem [shape: f32[1,256], index: 5, kind: input, shape index: {}]
  %s6 = inlined_call_operand.hbm [shape: bf16[256,128], index: 6, kind: input, shape index: {}]
  %s7 = inlined_call_operand.vmem [shape: f32[1,128], index: 7, kind: input, shape index: {}]
  %s8 = inlined_call_operand.vmem [shape: f32[48,128], index: 8, kind: output, shape index: {0}]
  %s9 = inlined_call_operand.vmem [shape: f32[48,128], index: 9, kind: output, shape index: {1}]
  %10 = xla_tuple %s8, %s9
  %s11 = sld [smem:[#allocation0]]
  $region85: #{decoder_c_fused.1} parent=0
    _
  %s13 = ssub.s32 1, %s11
  %s14 = scalar_select 0, %s13, %s11
  %s15 = sshll.u32 %s0, 4
  %s16 = int_to_ptr.vmem [resolvable:$true] %s15
  %18 = dma.vmem_to_smem %s16, 16, [#allocation4], [#allocation3]
  %19 = dma.done [#allocation3], 16
  %20 = sfence
  $region1: #{decoder_c_fused.1} parent=0
    #allocation5 [shape = 'u8[65536]{0}', space=vmem, size = 0x10000, scoped, tag = 'input window, operand 6, single buffered']
    #allocation6 [shape = 's32[2]{0}', space=sflag, size = 0x8, scoped, tag = 'scoped memory for decoder_c_fused.1']
    %21 = vsyncpa [#allocation6], 0
    loop: start=0, step=1, limit=5
    $region2: #{decoder_c_fused.1} parent=1 // loop_pre_header
      _
    $region3: #{decoder_c_fused.1} parent=1 // loop_header
      %s23 = sphi 0, %s27
      %p24 = scmp.ge.s32.totalorder %s23, 5
      %s33 = sphi 0, %s35
      %s36 = sphi 0, %s33
      %s37 = sphi 0, %s36
      %s53 = sphi 0, %s37
      %s57 = sphi 0, %s57
      %s59 = sphi 0, %s57
      %s60 = sphi 0, %s59
      %s74 = sphi 0, %s60
      %s78 = sphi 0, %s78
      %s80 = sphi 0, %s78
      %s81 = sphi 0, %s80
      %s95 = sphi 0, %s81
      %s99 = sphi 0, %s99
      %s101 = sphi 0, %s99
      %s102 = sphi 0, %s101
      %s116 = sphi 0, %s102
      %s120 = sphi 0, %s120
      %s122 = sphi 0, %s120
      %s123 = sphi 0, %s122
      %s137 = sphi 0, %s123
      %s141 = sphi 0, %s141
      %s143 = sphi 0, %s141
      %s144 = sphi 0, %s143
      %s158 = sphi 0, %s144
      %s162 = sphi 0, %s162
      %s164 = sphi 0, %s162
      %s165 = sphi 0, %s164
      %s179 = sphi 0, %s165
      %s185 = sphi 0, %s187
      %s188 = sphi 0, %s185
      %s189 = sphi 0, %s188
      %s205 = sphi 0, %s189
      %s211 = sphi 0, %s213
      %s214 = sphi 0, %s211
      %s215 = sphi 0, %s214
      %s231 = sphi 0, %s215
    $region4: #{decoder_c_fused.1} parent=1 // loop_header_branch
      %26 = sbr.rel (%p24) target = $region8
    $region5: #{decoder_c_fused.1} parent=1 // loop_body
      %s28 = ssub.s32 %s23, 1
      %s29 = ssub.s32 %s23, 2
      %s30 = sadd.s32 %s23, 1
      %s31 = ssub.s32 %s23, %s30
      %p32 = scmp.eq.s32.totalorder %s31, 0
      %s34 = sadd.s32 %s33, 1
      %s35 = scalar_select %p32, %s33, %s34
      %p38 = pneg %p32
      %p39 = scmp.eq.s32.totalorder %s23, 2
      %p40 = por %p38, %p39
      %p41 = scmp.ne.s32.totalorder %s33, %s36
      %p42 = scmp.eq.s32.totalorder %s23, 0
      %p43 = por %p41, %p42
      %p44 = scmp.ne.s32.totalorder %s33, %s36
      %p45 = scmp.eq.s32.totalorder %s28, 2
      %p46 = por %p44, %p45
      %p47 = scmp.ne.s32.totalorder %s36, %s37
      %p48 = scmp.eq.s32.totalorder %s28, 0
      %p49 = por %p47, %p48
      %p50 = scmp.ne.s32.totalorder %s36, %s37
      %p51 = scmp.eq.s32.totalorder %s29, 2
      %p52 = por %p50, %p51
      %p54 = scmp.ne.s32.totalorder %s37, %s53
      %p55 = scmp.eq.s32.totalorder %s29, 0
      %p56 = por %p54, %p55
      %s58 = sadd.s32 %s57, 1
      %p61 = scmp.eq.s32.totalorder %s23, 2
      %p62 = scmp.ne.s32.totalorder %s57, %s59
      %p63 = scmp.eq.s32.totalorder %s23, 0
      %p64 = por %p62, %p63
      %p65 = scmp.ne.s32.totalorder %s57, %s59
      %p66 = scmp.eq.s32.totalorder %s28, 2
      %p67 = por %p65, %p66
      %p68 = scmp.ne.s32.totalorder %s59, %s60
      %p69 = scmp.eq.s32.totalorder %s28, 0
      %p70 = por %p68, %p69
      %p71 = scmp.ne.s32.totalorder %s59, %s60
      %p72 = scmp.eq.s32.totalorder %s29, 2
      %p73 = por %p71, %p72
      %p75 = scmp.ne.s32.totalorder %s60, %s74
      %p76 = scmp.eq.s32.totalorder %s29, 0
      %p77 = por %p75, %p76
      %s79 = sadd.s32 %s78, 1
      %p82 = scmp.eq.s32.totalorder %s23, 2
      %p83 = scmp.ne.s32.totalorder %s78, %s80
      %p84 = scmp.eq.s32.totalorder %s23, 0
      %p85 = por %p83, %p84
      %p86 = scmp.ne.s32.totalorder %s78, %s80
      %p87 = scmp.eq.s32.totalorder %s28, 2
      %p88 = por %p86, %p87
      %p89 = scmp.ne.s32.totalorder %s80, %s81
      %p90 = scmp.eq.s32.totalorder %s28, 0
      %p91 = por %p89, %p90
      %p92 = scmp.ne.s32.totalorder %s80, %s81
      %p93 = scmp.eq.s32.totalorder %s29, 2
      %p94 = por %p92, %p93
      %p96 = scmp.ne.s32.totalorder %s81, %s95
      %p97 = scmp.eq.s32.totalorder %s29, 0
      %p98 = por %p96, %p97
      %s100 = sadd.s32 %s99, 1
      %p103 = scmp.eq.s32.totalorder %s23, 2
      %p104 = scmp.ne.s32.totalorder %s99, %s101
      %p105 = scmp.eq.s32.totalorder %s23, 0
      %p106 = por %p104, %p105
      %p107 = scmp.ne.s32.totalorder %s99, %s101
      %p108 = scmp.eq.s32.totalorder %s28, 2
      %p109 = por %p107, %p108
      %p110 = scmp.ne.s32.totalorder %s101, %s102
      %p111 = scmp.eq.s32.totalorder %s28, 0
      %p112 = por %p110, %p111
      %p113 = scmp.ne.s32.totalorder %s101, %s102
      %p114 = scmp.eq.s32.totalorder %s29, 2
      %p115 = por %p113, %p114
      %p117 = scmp.ne.s32.totalorder %s102, %s116
      %p118 = scmp.eq.s32.totalorder %s29, 0
      %p119 = por %p117, %p118
      %s121 = sadd.s32 %s120, 1
      %p124 = scmp.eq.s32.totalorder %s23, 2
      %p125 = scmp.ne.s32.totalorder %s120, %s122
      %p126 = scmp.eq.s32.totalorder %s23, 0
      %p127 = por %p125, %p126
      %p128 = scmp.ne.s32.totalorder %s120, %s122
      %p129 = scmp.eq.s32.totalorder %s28, 2
      %p130 = por %p128, %p129
      %p131 = scmp.ne.s32.totalorder %s122, %s123
      %p132 = scmp.eq.s32.totalorder %s28, 0
      %p133 = por %p131, %p132
      %p134 = scmp.ne.s32.totalorder %s122, %s123
      %p135 = scmp.eq.s32.totalorder %s29, 2
      %p136 = por %p134, %p135
      %p138 = scmp.ne.s32.totalorder %s123, %s137
      %p139 = scmp.eq.s32.totalorder %s29, 0
      %p140 = por %p138, %p139
      %s142 = sadd.s32 %s141, 1
      %p145 = scmp.eq.s32.totalorder %s23, 2
      %p146 = scmp.ne.s32.totalorder %s141, %s143
      %p147 = scmp.eq.s32.totalorder %s23, 0
      %p148 = por %p146, %p147
      %p149 = scmp.ne.s32.totalorder %s141, %s143
      %p150 = scmp.eq.s32.totalorder %s28, 2
      %p151 = por %p149, %p150
      %p152 = scmp.ne.s32.totalorder %s143, %s144
      %p153 = scmp.eq.s32.totalorder %s28, 0
      %p154 = por %p152, %p153
      %p155 = scmp.ne.s32.totalorder %s143, %s144
      %p156 = scmp.eq.s32.totalorder %s29, 2
      %p157 = por %p155, %p156
      %p159 = scmp.ne.s32.totalorder %s144, %s158
      %p160 = scmp.eq.s32.totalorder %s29, 0
      %p161 = por %p159, %p160
      %s163 = sadd.s32 %s162, 1
      %p166 = scmp.eq.s32.totalorder %s23, 2
      %p167 = scmp.ne.s32.totalorder %s162, %s164
      %p168 = scmp.eq.s32.totalorder %s23, 0
      %p169 = por %p167, %p168
      %p170 = scmp.ne.s32.totalorder %s162, %s164
      %p171 = scmp.eq.s32.totalorder %s28, 2
      %p172 = por %p170, %p171
      %p173 = scmp.ne.s32.totalorder %s164, %s165
      %p174 = scmp.eq.s32.totalorder %s28, 0
      %p175 = por %p173, %p174
      %p176 = scmp.ne.s32.totalorder %s164, %s165
      %p177 = scmp.eq.s32.totalorder %s29, 2
      %p178 = por %p176, %p177
      %p180 = scmp.ne.s32.totalorder %s165, %s179
      %p181 = scmp.eq.s32.totalorder %s29, 0
      %p182 = por %p180, %p181
      %s183 = ssub.s32 %s23, %s30
      %p184 = scmp.eq.s32.totalorder %s183, 0
      %s186 = sadd.s32 %s185, 1
      %s187 = scalar_select %p184, %s185, %s186
      %p190 = pneg %p184
      %p191 = scmp.eq.s32.totalorder %s23, 2
      %p192 = por %p190, %p191
      %p193 = scmp.ne.s32.totalorder %s185, %s188
      %p194 = scmp.eq.s32.totalorder %s23, 0
      %p195 = por %p193, %p194
      %p196 = scmp.ne.s32.totalorder %s185, %s188
      %p197 = scmp.eq.s32.totalorder %s28, 2
      %p198 = por %p196, %p197
      %p199 = scmp.ne.s32.totalorder %s188, %s189
      %p200 = scmp.eq.s32.totalorder %s28, 0
      %p201 = por %p199, %p200
      %p202 = scmp.ne.s32.totalorder %s188, %s189
      %p203 = scmp.eq.s32.totalorder %s29, 2
      %p204 = por %p202, %p203
      %p206 = scmp.ne.s32.totalorder %s189, %s205
      %p207 = scmp.eq.s32.totalorder %s29, 0
      %p208 = por %p206, %p207
      %s209 = ssub.s32 %s23, %s30
      %p210 = scmp.eq.s32.totalorder %s209, 0
      %s212 = sadd.s32 %s211, 1
      %s213 = scalar_select %p210, %s211, %s212
      %p216 = pneg %p210
      %p217 = scmp.eq.s32.totalorder %s23, 2
      %p218 = por %p216, %p217
      %p219 = scmp.ne.s32.totalorder %s211, %s214
      %p220 = scmp.eq.s32.totalorder %s23, 0
      %p221 = por %p219, %p220
      %p222 = scmp.ne.s32.totalorder %s211, %s214
      %p223 = scmp.eq.s32.totalorder %s28, 2
      %p224 = por %p222, %p223
      %p225 = scmp.ne.s32.totalorder %s214, %s215
      %p226 = scmp.eq.s32.totalorder %s28, 0
      %p227 = por %p225, %p226
      %p228 = scmp.ne.s32.totalorder %s214, %s215
      %p229 = scmp.eq.s32.totalorder %s29, 2
      %p230 = por %p228, %p229
      %p232 = scmp.ne.s32.totalorder %s215, %s231
      %p233 = scmp.eq.s32.totalorder %s29, 0
      %p234 = por %p232, %p233
      %p235 = scmp.le.s32.totalorder 1, %s23
      %p236 = scmp.lt.s32.totalorder %s23, 4
      %p237 = pnand %p235, %p236
      %p238 = pneg %p237
      // Predicated region
      $region9: #{decoder_c_fused.1} parent=5 // pred_check
        _
      $region10: #{decoder_c_fused.1} parent=5 // pred_check_branch
        %240 = sbr.rel (%p237) target = $region12
      $region11: #{decoder_c_fused.1} parent=5 // pred_region
        %s241 = ssub.s32 %s23, 1
        // Predicated region
        $region13: #{decoder_c_fused.1} parent=11 // pred_check
          %p242 = pneg %p70
        $region14: #{decoder_c_fused.1} parent=11 // pred_check_branch
          %244 = sbr.rel (%p242) target = $region16
        $region15: #{decoder_c_fused.1} parent=11 // pred_region
          _
        $region16: #{decoder_c_fused.1} parent=11 // pred_fallthru
          _
        // Predicated region
        $region17: #{decoder_c_fused.1} parent=11 // pred_check
          %p245 = pneg %p91
        $region18: #{decoder_c_fused.1} parent=11 // pred_check_branch
          %247 = sbr.rel (%p245) target = $region20
        $region19: #{decoder_c_fused.1} parent=11 // pred_region
          _
        $region20: #{decoder_c_fused.1} parent=11 // pred_fallthru
          _
        // Predicated region
        $region21: #{decoder_c_fused.1} parent=11 // pred_check
          %p248 = pneg %p112
        $region22: #{decoder_c_fused.1} parent=11 // pred_check_branch
          %250 = sbr.rel (%p248) target = $region24
        $region23: #{decoder_c_fused.1} parent=11 // pred_region
          _
        $region24: #{decoder_c_fused.1} parent=11 // pred_fallthru
          _
        // Predicated region
        $region25: #{decoder_c_fused.1} parent=11 // pred_check
          %p251 = pneg %p133
        $region26: #{decoder_c_fused.1} parent=11 // pred_check_branch
          %253 = sbr.rel (%p251) target = $region28
        $region27: #{decoder_c_fused.1} parent=11 // pred_region
          _
        $region28: #{decoder_c_fused.1} parent=11 // pred_fallthru
          _
        // Predicated region
        $region29: #{decoder_c_fused.1} parent=11 // pred_check
          %p254 = pneg %p154
        $region30: #{decoder_c_fused.1} parent=11 // pred_check_branch
          %256 = sbr.rel (%p254) target = $region32
        $region31: #{decoder_c_fused.1} parent=11 // pred_region
          %s258 = ssub.s32 2048, 2048
          %259 = vsyncadd [#allocation6], %s258
          %s260 = sshll.u32 [#allocation5], 4
          %s261 = int_to_ptr.vmem [resolvable:$true] %s260
          %266 = dma.hbm_to_vmem [thread:$0]  %s6, 2048, %s261, [#allocation6], 64, 64, 4
        $region32: #{decoder_c_fused.1} parent=11 // pred_fallthru
          _
        // Predicated region
        $region33: #{decoder_c_fused.1} parent=11 // pred_check
          %p267 = pneg %p175
        $region34: #{decoder_c_fused.1} parent=11 // pred_check_branch
          %269 = sbr.rel (%p267) target = $region36
        $region35: #{decoder_c_fused.1} parent=11 // pred_region
          _
        $region36: #{decoder_c_fused.1} parent=11 // pred_fallthru
          _
      $region12: #{decoder_c_fused.1} parent=5 // pred_fallthru
        _
      %p270 = scmp.lt.s32.totalorder %s23, 3
      // Predicated region
      $region37: #{decoder_c_fused.1} parent=5 // pred_check
        %p271 = pneg %p270
      $region38: #{decoder_c_fused.1} parent=5 // pred_check_branch
        %273 = sbr.rel (%p271) target = $region40
      $region39: #{decoder_c_fused.1} parent=5 // pred_region
        // Predicated region
        $region41: #{decoder_c_fused.1} parent=39 // pred_check
          %p274 = pneg %p43
        $region42: #{decoder_c_fused.1} parent=39 // pred_check_branch
          %276 = sbr.rel (%p274) target = $region44
        $region43: #{decoder_c_fused.1} parent=39 // pred_region
          %s277 = smul.u32 2, %s23
          %p278 = scmp.lt.s32.totalorder %s277, 5
          %s279 = scalar_select %p278, %s277, 5
          %s280 = smul.addr %s279, 8
          %s281 = scalar_lea.vmem %s1, %s280
          %s282 = smul.u32 2, %s23
        $region44: #{decoder_c_fused.1} parent=39 // pred_fallthru
          _
      $region40: #{decoder_c_fused.1} parent=5 // pred_fallthru
        _
      %p283 = scmp.le.s32.totalorder 1, %s23
      %p284 = scmp.lt.s32.totalorder %s23, 4
      %p285 = pnand %p283, %p284
      %p286 = pneg %p285
      // Predicated region
      $region45: #{decoder_c_fused.1} parent=5 // pred_check
        _
      $region46: #{decoder_c_fused.1} parent=5 // pred_check_branch
        %288 = sbr.rel (%p285) target = $region48
      $region47: #{decoder_c_fused.1} parent=5 // pred_region
        %s289 = ssub.s32 %s23, 1
        // Predicated region
        $region49: #{decoder_c_fused.1} parent=47 // pred_check
          %p290 = pneg %p154
        $region50: #{decoder_c_fused.1} parent=47 // pred_check_branch
          %292 = sbr.rel (%p290) target = $region52
        $region51: #{decoder_c_fused.1} parent=47 // pred_region
          %293 = dma.done [#allocation6], 2048
        $region52: #{decoder_c_fused.1} parent=47 // pred_fallthru
          _
        %s294 = smul.u32 2, %s28
        %p295 = scmp.lt.s32.totalorder %s294, 5
        %s296 = scalar_select %p295, %s294, 5
        %s297 = smul.addr %s296, 8
        %s298 = scalar_lea.vmem %s1, %s297
        %p299 = pneg %p49
        %p300 = pneg %p46
        %p301 = pneg %p70
        %p302 = pneg %p67
        %p303 = pneg %p91
        %p304 = pneg %p88
        %p305 = pneg %p112
        %p306 = pneg %p109
        %p307 = pneg %p133
        %p308 = pneg %p130
        %p309 = pneg %p154
        %p310 = pneg %p151
        %p311 = pneg %p175
        %p312 = pneg %p172
        %p313 = pneg %p201
        %p314 = pneg %p198
        %s315 = smul.u32 2, %s28
        %p316 = scmp.lt.s32.totalorder %s315, 5
        %s317 = scalar_select %p316, %s315, 5
        %s318 = smul.addr %s317, 8
        %s319 = scalar_lea.vmem %s8, %s318
        %p320 = pneg %p227
        %p321 = pneg %p224
        %s322 = smul.u32 2, %s28
        %p323 = scmp.lt.s32.totalorder %s322, 5
        %s324 = scalar_select %p323, %s322, 5
        %s325 = smul.addr %s324, 8
        %s326 = scalar_lea.vmem %s9, %s325
        %s327 = smul.u32 2, %s28
        %p328 = scmp.lt.s32.totalorder %s327, 5
        %s329 = scalar_select %p328, %s327, 5
        %s330 = smul.addr %s329, 8
        %s331 = scalar_lea.vmem %s1, %s330
        %s332 = smul.u32 2, %s28
        %s333 = smul.u32 2, %s28
        %p334 = scmp.lt.s32.totalorder %s333, 5
        %s335 = scalar_select %p334, %s333, 5
        %s336 = smul.addr %s335, 8
        %s337 = scalar_lea.vmem %s8, %s336
        %s338 = smul.u32 2, %s28
        %s339 = smul.u32 2, %s28
        %p340 = scmp.lt.s32.totalorder %s339, 5
        %s341 = scalar_select %p340, %s339, 5
        %s342 = smul.addr %s341, 8
        %s343 = scalar_lea.vmem %s9, %s342
        %s344 = smul.u32 2, %s28
        %s346 = sld [smem:[#allocation4 + %s28]]
        %v347 = vld [vmem:[%s331] sm:$0xff]
        %v348 = vld [vmem:[%s331 + $0x8] sm:$0xff]
        %p349 = scmp.eq.s32.totalorder %s346, 0
        // Predicated region
        $region53: #{decoder_c_fused.1} parent=47 // pred_check
          %p350 = pneg %p349
        $region54: #{decoder_c_fused.1} parent=47 // pred_check_branch
          %352 = sbr.rel (%p350) target = $region56
        $region55: #{decoder_c_fused.1} parent=47 // pred_region
          %353 = vst [vmem:[#allocation2] sm:$0xff] %v347
          %354 = vst [vmem:[#allocation2 + $0x8] sm:$0xff] %v348
        $region56: #{decoder_c_fused.1} parent=47 // pred_fallthru
          _
        %p355 = scmp.eq.s32.totalorder %s346, 1
        // Predicated region
        $region57: #{decoder_c_fused.1} parent=47 // pred_check
          %p356 = pneg %p355
        $region58: #{decoder_c_fused.1} parent=47 // pred_check_branch
          %358 = sbr.rel (%p356) target = $region60
        $region59: #{decoder_c_fused.1} parent=47 // pred_region
          %v359 = vadd.f32 %v347, 1e-09
          %v360 = vadd.f32 %v348, 1e-09
          %v361 = vrsqrt.pop %v359
          %v362 = vmul.f32 %v359, %v361
          %vm363 = vcmp.eq.f32.partialorder %v359, inf
          %v364 = vsel %vm363, %v359, %v362
          %vm365 = vcmp.eq.f32.partialorder %v359, 0.0
          %v366 = vand.u32 %v359, 2147483648
          %v367 = vsel %vm365, %v366, %v364
          %v368 = vrsqrt.pop %v360
          %v369 = vmul.f32 %v360, %v368
          %vm370 = vcmp.eq.f32.partialorder %v360, inf
          %v371 = vsel %vm370, %v360, %v369
          %vm372 = vcmp.eq.f32.partialorder %v360, 0.0
          %v373 = vand.u32 %v360, 2147483648
          %v374 = vsel %vm372, %v373, %v371
          %v375 = vrsqrt.pop %v367
          %v376 = vmul.f32 %v367, %v375
          %vm377 = vcmp.eq.f32.partialorder %v367, inf
          %v378 = vsel %vm377, %v367, %v376
          %vm379 = vcmp.eq.f32.partialorder %v367, 0.0
          %v380 = vand.u32 %v367, 2147483648
          %v381 = vsel %vm379, %v380, %v378
          %v382 = vrsqrt.pop %v374
          %v383 = vmul.f32 %v374, %v382
          %vm384 = vcmp.eq.f32.partialorder %v374, inf
          %v385 = vsel %vm384, %v374, %v383
          %vm386 = vcmp.eq.f32.partialorder %v374, 0.0
          %v387 = vand.u32 %v374, 2147483648
          %v388 = vsel %vm386, %v387, %v385
          %389 = vst [vmem:[#allocation2] sm:$0xff] %v381
          %390 = vst [vmem:[#allocation2 + $0x8] sm:$0xff] %v388
        $region60: #{decoder_c_fused.1} parent=47 // pred_fallthru
          _
        %p391 = scmp.eq.s32.totalorder %s346, 2
        // Predicated region
        $region61: #{decoder_c_fused.1} parent=47 // pred_check
          %p392 = pneg %p391
        $region62: #{decoder_c_fused.1} parent=47 // pred_check_branch
          %394 = sbr.rel (%p392) target = $region64
        $region63: #{decoder_c_fused.1} parent=47 // pred_region
          %v395 = vadd.f32 %v347, 1e-09
          %v396 = vadd.f32 %v348, 1e-09
          %v397 = vlog2.pop %v395
          %v398 = vmul.f32 %v397, 0.6931472
          %v399 = vlog2.pop %v396
          %v400 = vmul.f32 %v399, 0.6931472
          %v401 = vmul.f32 %v398, 0.33333334
          %v402 = vmul.f32 %v400, 0.33333334
          %v403 = vmul.f32 %v401, 1.442695
          %v404 = vpow.pop %v403
          %v405 = vmul.f32 %v402, 1.442695
          %v406 = vpow.pop %v405
          %407 = vst [vmem:[#allocation2] sm:$0xff] %v404
          %408 = vst [vmem:[#allocation2 + $0x8] sm:$0xff] %v406
        $region64: #{decoder_c_fused.1} parent=47 // pred_fallthru
          _
        %v409 = vld [vmem:[#allocation2] sm:$0xff]
        %v410 = vld [vmem:[#allocation2 + $0x8] sm:$0xff]
        %v411 = vpack.c.bf16 %v410, %v409
        %v412 = vld [vmem:[%s4] sm:$0xff]
        %v413 = vld [vmem:[%s4 + $0x8] sm:$0xff]
        %v414 = vld [vmem:[%s4 + $0x10] sm:$0xff]
        %v415 = vld [vmem:[%s4 + $0x18] sm:$0xff]
        %v416 = vld [vmem:[%s4 + $0x20] sm:$0xff]
        %v417 = vld [vmem:[%s4 + $0x28] sm:$0xff]
        %v418 = vld [vmem:[%s4 + $0x30] sm:$0xff]
        %v419 = vld [vmem:[%s4 + $0x38] sm:$0xff]
        %v420 = vld [vmem:[%s4 + $0x40] sm:$0xff]
        %v421 = vld [vmem:[%s4 + $0x48] sm:$0xff]
        %v422 = vld [vmem:[%s4 + $0x50] sm:$0xff]
        %v423 = vld [vmem:[%s4 + $0x58] sm:$0xff]
        %v424 = vld [vmem:[%s4 + $0x60] sm:$0xff]
        %v425 = vld [vmem:[%s4 + $0x68] sm:$0xff]
        %v426 = vld [vmem:[%s4 + $0x70] sm:$0xff]
        %v427 = vld [vmem:[%s4 + $0x78] sm:$0xff]
        %v428 = vld [vmem:[%s5] sm:$0x3]
        %v430 = vlaneseq
        %v431 = vshrl.u32 %v430, 7
        %v432 = vsub.s32 0, %v431
        %v433 = vrot.slane %v428, %v432
        %v434 = vlaneseq
        %v435 = vshrl.u32 %v434, 7
        %v436 = vsub.s32 1, %v435
        %v437 = vrot.slane %v428, %v436
        %v456 = vunpack.c.l.b16 %v412
        %v457 = vunpack.c.h.b16 %v412
        %v458 = vunpack.c.l.b16 %v413
        %v459 = vunpack.c.h.b16 %v413
        %v460 = vunpack.c.l.b16 %v414
        %v461 = vunpack.c.h.b16 %v414
        %v462 = vunpack.c.l.b16 %v415
        %v463 = vunpack.c.h.b16 %v415
        %v464 = vunpack.c.l.b16 %v416
        %v465 = vunpack.c.h.b16 %v416
        %v466 = vunpack.c.l.b16 %v417
        %v467 = vunpack.c.h.b16 %v417
        %v468 = vunpack.c.l.b16 %v418
        %v469 = vunpack.c.h.b16 %v418
        %v470 = vunpack.c.l.b16 %v419
        %v471 = vunpack.c.h.b16 %v419
        %v472 = vunpack.c.l.b16 %v420
        %v473 = vunpack.c.h.b16 %v420
        %v474 = vunpack.c.l.b16 %v421
        %v475 = vunpack.c.h.b16 %v421
        %v476 = vunpack.c.l.b16 %v422
        %v477 = vunpack.c.h.b16 %v422
        %v478 = vunpack.c.l.b16 %v423
        %v479 = vunpack.c.h.b16 %v423
        %v480 = vunpack.c.l.b16 %v424
        %v481 = vunpack.c.h.b16 %v424
        %v482 = vunpack.c.l.b16 %v425
        %v483 = vunpack.c.h.b16 %v425
        %v484 = vunpack.c.l.b16 %v426
        %v485 = vunpack.c.h.b16 %v426
        %v486 = vunpack.c.l.b16 %v427
        %v487 = vunpack.c.h.b16 %v427
        %v488 = vpack.c.b16 %v458, %v456
        %v489 = vpack.c.b16 %v459, %v457
        %v490 = vpack.c.b16 %v462, %v460
        %v491 = vpack.c.b16 %v463, %v461
        %v492 = vpack.c.b16 %v466, %v464
        %v493 = vpack.c.b16 %v467, %v465
        %v494 = vpack.c.b16 %v470, %v468
        %v495 = vpack.c.b16 %v471, %v469
        %v496 = vpack.c.b16 %v474, %v472
        %v497 = vpack.c.b16 %v475, %v473
        %v498 = vpack.c.b16 %v478, %v476
        %v499 = vpack.c.b16 %v479, %v477
        %v500 = vpack.c.b16 %v482, %v480
        %v501 = vpack.c.b16 %v483, %v481
        %v502 = vpack.c.b16 %v486, %v484
        %v503 = vpack.c.b16 %v487, %v485
        %520 = vmatprep.subr.bf16.mxu0 %v489
        %521 = vmatpush1.bf16.msra.mxu0 %v488
        %522 = vmatprep.subr.bf16.mxu0 %v491
        %523 = vmatpush1.bf16.msra.mxu0 %v490
        %524 = vmatprep.subr.bf16.mxu0 %v493
        %525 = vmatpush1.bf16.msra.mxu0 %v492
        %526 = vmatprep.subr.bf16.mxu0 %v495
        %527 = vmatpush1.bf16.msra.mxu0 %v494
        %528 = vmatprep.subr.bf16.mxu0 %v497
        %529 = vmatpush1.bf16.msra.mxu0 %v496
        %530 = vmatprep.subr.bf16.mxu0 %v499
        %531 = vmatpush1.bf16.msra.mxu0 %v498
        %532 = vmatprep.subr.bf16.mxu0 %v501
        %533 = vmatpush1.bf16.msra.mxu0 %v500
        %534 = vmatprep.subr.bf16.mxu0 %v503
        %535 = vmatpush1.bf16.msra.mxu0 %v502
        %536 = vmatprep.subr.bf16.mxu0 0
        %537 = vmatpush1.bf16.msra.mxu0 0
        %538 = vmatprep.subr.bf16.mxu0 0
        %539 = vmatpush1.bf16.msra.mxu0 0
        %540 = vmatprep.subr.bf16.mxu0 0
        %541 = vmatpush1.bf16.msra.mxu0 0
        %542 = vmatprep.subr.bf16.mxu0 0
        %543 = vmatpush1.bf16.msra.mxu0 0
        %544 = vmatprep.subr.bf16.mxu0 0
        %545 = vmatpush1.bf16.msra.mxu0 0
        %546 = vmatprep.subr.bf16.mxu0 0
        %547 = vmatpush1.bf16.msra.mxu0 0
        %548 = vmatprep.subr.bf16.mxu0 0
        %549 = vmatpush1.bf16.msra.mxu0 0
        %550 = vmatprep.subr.bf16.mxu0 0
        %551 = vmatpush1.bf16.msra.mxu0 0
        %552 = vmatprep.mubr.bf16.mxu0 0
        %553 = vmatmul.mubr.bf16.gmra.mrb[0].mxu0 %v411
        %v554 = vpop.f32.mrb[0].mxu0
        %v555 = vadd.f32 %v433, %v554
        %v556 = vpop.f32.mrb[0].mxu0
        %v557 = vadd.f32 %v437, %v556
        %v558 = vpop.f32.mrb[0].mxu0
        %v559 = vadd.f32 %v433, %v558
        %v560 = vpop.f32.mrb[0].mxu0
        %v561 = vadd.f32 %v437, %v560
        %562 = vdwg.mxu0
        %v563 = vmax.f32 %v555, 0.0
        %v564 = vmax.f32 %v557, 0.0
        %v565 = vmax.f32 %v559, 0.0
        %v566 = vmax.f32 %v561, 0.0
        %v567 = vpack.c.bf16 %v565, %v563
        %v568 = vpack.c.bf16 %v566, %v564
        %v569 = vld [vmem:[#allocation5] sm:$0xf]
        %v570 = vld [vmem:[#allocation5 + $0x4] sm:$0xf]
        %v571 = vld [vmem:[#allocation5 + $0x8] sm:$0xf]
        %v572 = vld [vmem:[#allocation5 + $0xc] sm:$0xf]
        %v573 = vld [vmem:[#allocation5 + $0x10] sm:$0xf]
        %v574 = vld [vmem:[#allocation5 + $0x14] sm:$0xf]
        %v575 = vld [vmem:[#allocation5 + $0x18] sm:$0xf]
        %v576 = vld [vmem:[#allocation5 + $0x1c] sm:$0xf]
        %v577 = vld [vmem:[#allocation5 + $0x20] sm:$0xf]
        %v578 = vld [vmem:[#allocation5 + $0x24] sm:$0xf]
        %v579 = vld [vmem:[#allocation5 + $0x28] sm:$0xf]
        %v580 = vld [vmem:[#allocation5 + $0x2c] sm:$0xf]
        %v581 = vld [vmem:[#allocation5 + $0x30] sm:$0xf]
        %v582 = vld [vmem:[#allocation5 + $0x34] sm:$0xf]
        %v583 = vld [vmem:[#allocation5 + $0x38] sm:$0xf]
        %v584 = vld [vmem:[#allocation5 + $0x3c] sm:$0xf]
        %v585 = vld [vmem:[#allocation5 + $0x40] sm:$0xf]
        %v586 = vld [vmem:[#allocation5 + $0x44] sm:$0xf]
        %v587 = vld [vmem:[#allocation5 + $0x48] sm:$0xf]
        %v588 = vld [vmem:[#allocation5 + $0x4c] sm:$0xf]
        %v589 = vld [vmem:[#allocation5 + $0x50] sm:$0xf]
        %v590 = vld [vmem:[#allocation5 + $0x54] sm:$0xf]
        %v591 = vld [vmem:[#allocation5 + $0x58] sm:$0xf]
        %v592 = vld [vmem:[#allocation5 + $0x5c] sm:$0xf]
        %v593 = vld [vmem:[#allocation5 + $0x60] sm:$0xf]
        %v594 = vld [vmem:[#allocation5 + $0x64] sm:$0xf]
        %v595 = vld [vmem:[#allocation5 + $0x68] sm:$0xf]
        %v596 = vld [vmem:[#allocation5 + $0x6c] sm:$0xf]
        %v597 = vld [vmem:[#allocation5 + $0x70] sm:$0xf]
        %v598 = vld [vmem:[#allocation5 + $0x74] sm:$0xf]
        %v599 = vld [vmem:[#allocation5 + $0x78] sm:$0xf]
        %v600 = vld [vmem:[#allocation5 + $0x7c] sm:$0xf]
        %v601 = vld [vmem:[%s7] sm:$0x1]
        %v603 = vlaneseq
        %v604 = vshrl.u32 %v603, 7
        %v605 = vsub.s32 0, %v604
        %v606 = vrot.slane %v601, %v605
        %v640 = vunpack.c.l.b16 %v569
        %v641 = vunpack.c.l.b16 %v570
        %v642 = vunpack.c.l.b16 %v571
        %v643 = vunpack.c.l.b16 %v572
        %v644 = vunpack.c.l.b16 %v573
        %v645 = vunpack.c.l.b16 %v574
        %v646 = vunpack.c.l.b16 %v575
        %v647 = vunpack.c.l.b16 %v576
        %v648 = vunpack.c.l.b16 %v577
        %v649 = vunpack.c.l.b16 %v578
        %v650 = vunpack.c.l.b16 %v579
        %v651 = vunpack.c.l.b16 %v580
        %v652 = vunpack.c.l.b16 %v581
        %v653 = vunpack.c.l.b16 %v582
        %v654 = vunpack.c.l.b16 %v583
        %v655 = vunpack.c.l.b16 %v584
        %v656 = vunpack.c.l.b16 %v585
        %v657 = vunpack.c.l.b16 %v586
        %v658 = vunpack.c.l.b16 %v587
        %v659 = vunpack.c.l.b16 %v588
        %v660 = vunpack.c.l.b16 %v589
        %v661 = vunpack.c.l.b16 %v590
        %v662 = vunpack.c.l.b16 %v591
        %v663 = vunpack.c.l.b16 %v592
        %v664 = vunpack.c.l.b16 %v593
        %v665 = vunpack.c.l.b16 %v594
        %v666 = vunpack.c.l.b16 %v595
        %v667 = vunpack.c.l.b16 %v596
        %v668 = vunpack.c.l.b16 %v597
        %v669 = vunpack.c.l.b16 %v598
        %v670 = vunpack.c.l.b16 %v599
        %v671 = vunpack.c.l.b16 %v600
        %v672 = vpack.c.b16 %v641, %v640
        %v673 = vpack.c.b16 %v643, %v642
        %v674 = vpack.c.b16 %v645, %v644
        %v675 = vpack.c.b16 %v647, %v646
        %v676 = vpack.c.b16 %v649, %v648
        %v677 = vpack.c.b16 %v651, %v650
        %v678 = vpack.c.b16 %v653, %v652
        %v679 = vpack.c.b16 %v655, %v654
        %v680 = vpack.c.b16 %v657, %v656
        %v681 = vpack.c.b16 %v659, %v658
        %v682 = vpack.c.b16 %v661, %v660
        %v683 = vpack.c.b16 %v663, %v662
        %v684 = vpack.c.b16 %v665, %v664
        %v685 = vpack.c.b16 %v667, %v666
        %v686 = vpack.c.b16 %v669, %v668
        %v687 = vpack.c.b16 %v671, %v670
        %704 = vmatprep.subr.bf16.mxu0 0
        %705 = vmatpush1.bf16.msra.mxu0 %v672
        %706 = vmatprep.subr.bf16.mxu0 0
        %707 = vmatpush1.bf16.msra.mxu0 %v673
        %708 = vmatprep.subr.bf16.mxu0 0
        %709 = vmatpush1.bf16.msra.mxu0 %v674
        %710 = vmatprep.subr.bf16.mxu0 0
        %711 = vmatpush1.bf16.msra.mxu0 %v675
        %712 = vmatprep.subr.bf16.mxu0 0
        %713 = vmatpush1.bf16.msra.mxu0 %v676
        %714 = vmatprep.subr.bf16.mxu0 0
        %715 = vmatpush1.bf16.msra.mxu0 %v677
        %716 = vmatprep.subr.bf16.mxu0 0
        %717 = vmatpush1.bf16.msra.mxu0 %v678
        %718 = vmatprep.subr.bf16.mxu0 0
        %719 = vmatpush1.bf16.msra.mxu0 %v679
        %720 = vmatprep.subr.bf16.mxu0 0
        %721 = vmatpush1.bf16.msra.mxu0 %v680
        %722 = vmatprep.subr.bf16.mxu0 0
        %723 = vmatpush1.bf16.msra.mxu0 %v681
        %724 = vmatprep.subr.bf16.mxu0 0
        %725 = vmatpush1.bf16.msra.mxu0 %v682
        %726 = vmatprep.subr.bf16.mxu0 0
        %727 = vmatpush1.bf16.msra.mxu0 %v683
        %728 = vmatprep.subr.bf16.mxu0 0
        %729 = vmatpush1.bf16.msra.mxu0 %v684
        %730 = vmatprep.subr.bf16.mxu0 0
        %731 = vmatpush1.bf16.msra.mxu0 %v685
        %732 = vmatprep.subr.bf16.mxu0 0
        %733 = vmatpush1.bf16.msra.mxu0 %v686
        %734 = vmatprep.subr.bf16.mxu0 0
        %735 = vmatpush1.bf16.msra.mxu0 %v687
        %736 = vmatprep.mubr.bf16.mxu0 %v568
        %737 = vmatmul.mubr.bf16.gmra.mrb[0].mxu0 %v567
        %v738 = vpop.f32.mrb[0].mxu0
        %v739 = vadd.f32 %v606, %v738
        %v740 = vpop.f32.mrb[0].mxu0
        %v741 = vpop.f32.mrb[0].mxu0
        %v742 = vadd.f32 %v606, %v741
        %v743 = vpop.f32.mrb[0].mxu0
        %744 = vdwg.mxu0
        %v745 = vadd.f32 %v739, 1e-09
        %v746 = vadd.f32 %v742, 1e-09
        %747 = vmax.xlane.f32.xlu0 %v745
        %v748 = vpop.xlane.xlu0 %747
        %749 = vmax.xlane.f32.xlu0 %v746
        %v750 = vpop.xlane.xlu0 %749
        %v751 = vsub.f32 %v745, %v748
        %v752 = vsub.f32 %v746, %v750
        %v753 = vmul.f32 %v751, 1.442695
        %v754 = vpow.pop %v753
        %v755 = vmul.f32 %v752, 1.442695
        %v756 = vpow.pop %v755
        %757 = vadd.xlane.f32.xlu0 %v754
        %v758 = vpop.xlane.xlu0 %757
        %759 = vadd.xlane.f32.xlu0 %v756
        %v760 = vpop.xlane.xlu0 %759
        %v761 = vlog2.pop %v758
        %v762 = vmul.f32 %v761, 0.6931472
        %v763 = vlog2.pop %v760
        %v764 = vmul.f32 %v763, 0.6931472
        %v765 = vadd.f32 %v762, %v748
        %v766 = vadd.f32 %v764, %v750
        %v767 = vsub.f32 %v745, %v765
        %v768 = vsub.f32 %v746, %v766
        %769 = vst [vmem:[%s337] sm:$0xff] %v767
        %770 = vst [vmem:[%s337 + $0x8] sm:$0xff] %v768
        %v771 = vld [vmem:[%s2] sm:$0xff]
        %v772 = vmul.f32 %v771, %v767
        %v773 = vmul.f32 %v771, %v768
        %774 = vadd.xlane.f32.xlu0 %v772
        %v775 = vpop.xlane.xlu0 %774
        %776 = vadd.xlane.f32.xlu0 %v773
        %v777 = vpop.xlane.xlu0 %776
        %v778 = vsub.f32 0.0, %v775
        %v779 = vsub.f32 0.0, %v777
        %v780 = vlaneseq
        %v781 = vand.u32 %v780, 127
        %vm782 = vcmp.eq.f32.partialorder %v745, %v748
        %vm783 = vcmp.eq.f32.partialorder %v746, %v750
        %v784 = vsel %vm782, %v781, 128
        %v785 = vsel %vm783, %v781, 128
        %v786 = vand.u32 %v784, 65535
        %v787 = vshra.s32 %v784, 16
        %v788 = vcvt.s32.f32 %v786
        %v789 = vcvt.s32.f32 %v787
        %790 = vmin.xlane.f32.xlu0 %v789
        %v791 = vpop.xlane.xlu0 %790
        %vm792 = vcmp.eq.f32.partialorder %v789, %v791
        %v793 = vsel %vm792, %v788, inf
        %794 = vmin.xlane.f32.xlu0 %v793
        %v795 = vpop.xlane.xlu0 %794
        %v796 = vcvt.f32.s32 %v795
        %v797 = vcvt.f32.s32 %v791
        %v798 = vshll.u32 %v797, 16
        %v799 = vadd.s32 %v798, %v796
        %v800 = vand.u32 %v785, 65535
        %v801 = vshra.s32 %v785, 16
        %v802 = vcvt.s32.f32 %v800
        %v803 = vcvt.s32.f32 %v801
        %804 = vmin.xlane.f32.xlu0 %v803
        %v805 = vpop.xlane.xlu0 %804
        %vm806 = vcmp.eq.f32.partialorder %v803, %v805
        %v807 = vsel %vm806, %v802, inf
        %808 = vmin.xlane.f32.xlu0 %v807
        %v809 = vpop.xlane.xlu0 %808
        %v810 = vcvt.f32.s32 %v809
        %v811 = vcvt.f32.s32 %v805
        %v812 = vshll.u32 %v811, 16
        %v813 = vadd.s32 %v812, %v810
        %v814 = vcvt.s32.f32 %v799
        %v815 = vcvt.s32.f32 %v813
        %v816 = vld [vmem:[%s3] sm:$0xff]
        %vm817 = vcmp.ne.f32.partialorder %v814, %v816
        %vm818 = vcmp.ne.f32.partialorder %v815, %v816
        %v819 = vsel %vm817, 1, 0
        %v820 = vsel %vm818, 1, 0
        %v821 = vcvt.s32.f32 %v819
        %v822 = vcvt.s32.f32 %v820
        %vm823 = vcmp.eq.s32.totalorder %v781, 0
        %vm824 = vcmp.eq.s32.totalorder %v781, 1
        %826 = vset.pattern.permute.xlu0 0
        %827 = vperm.xlu0 %826, %v821
        %v828 = vpop.permute.xlu0 %827
        %831 = vset.pattern.permute.xlu0 0
        %832 = vperm.xlu0 %831, %v822
        %v833 = vpop.permute.xlu0 %832
        %v835 = vsel %vm824, %v828, 0.0
        %v836 = vsel %vm824, %v833, 0.0
        %v837 = vsel %vm823, %v778, %v835
        %v838 = vsel %vm823, %v779, %v836
        %839 = vst [vmem:[%s343] sm:$0xff] %v837
        %840 = vst [vmem:[%s343 + $0x8] sm:$0xff] %v838
        %s841 = smul.u32 2, %s28
        %p842 = scmp.lt.s32.totalorder %s841, 5
        %s843 = scalar_select %p842, %s841, 5
        %s844 = smul.addr %s843, 8
        %s845 = scalar_lea.vmem %s8, %s844
        %s846 = smul.u32 2, %s28
        %p847 = scmp.lt.s32.totalorder %s846, 5
        %s848 = scalar_select %p847, %s846, 5
        %s849 = smul.addr %s848, 8
        %s850 = scalar_lea.vmem %s9, %s849
        // Predicated region
        $region65: #{decoder_c_fused.1} parent=47 // pred_check
          %p851 = pneg %p198
        $region66: #{decoder_c_fused.1} parent=47 // pred_check_branch
          %853 = sbr.rel (%p851) target = $region68
        $region67: #{decoder_c_fused.1} parent=47 // pred_region
          %s854 = smul.u32 2, %s28
        $region68: #{decoder_c_fused.1} parent=47 // pred_fallthru
          _
        // Predicated region
        $region69: #{decoder_c_fused.1} parent=47 // pred_check
          %p855 = pneg %p224
        $region70: #{decoder_c_fused.1} parent=47 // pred_check_branch
          %857 = sbr.rel (%p855) target = $region72
        $region71: #{decoder_c_fused.1} parent=47 // pred_region
          %s858 = smul.u32 2, %s28
        $region72: #{decoder_c_fused.1} parent=47 // pred_fallthru
          _
      $region48: #{decoder_c_fused.1} parent=5 // pred_fallthru
        _
      %p859 = scmp.le.s32.totalorder 2, %s23
      // Predicated region
      $region73: #{decoder_c_fused.1} parent=5 // pred_check
        %p860 = pneg %p859
      $region74: #{decoder_c_fused.1} parent=5 // pred_check_branch
        %862 = sbr.rel (%p860) target = $region76
      $region75: #{decoder_c_fused.1} parent=5 // pred_region
        %s863 = ssub.s32 %s23, 2
        // Predicated region
        $region77: #{decoder_c_fused.1} parent=75 // pred_check
          %p864 = pneg %p204
        $region78: #{decoder_c_fused.1} parent=75 // pred_check_branch
          %866 = sbr.rel (%p864) target = $region80
        $region79: #{decoder_c_fused.1} parent=75 // pred_region
          %s867 = smul.u32 2, %s29
          %p868 = scmp.lt.s32.totalorder %s867, 5
          %s869 = scalar_select %p868, %s867, 5
          %s870 = smul.addr %s869, 8
          %s871 = scalar_lea.vmem %s8, %s870
        $region80: #{decoder_c_fused.1} parent=75 // pred_fallthru
          _
        // Predicated region
        $region81: #{decoder_c_fused.1} parent=75 // pred_check
          %p872 = pneg %p230
        $region82: #{decoder_c_fused.1} parent=75 // pred_check_branch
          %874 = sbr.rel (%p872) target = $region84
        $region83: #{decoder_c_fused.1} parent=75 // pred_region
          %s875 = smul.u32 2, %s29
          %p876 = scmp.lt.s32.totalorder %s875, 5
          %s877 = scalar_select %p876, %s875, 5
          %s878 = smul.addr %s877, 8
          %s879 = scalar_lea.vmem %s9, %s878
        $region84: #{decoder_c_fused.1} parent=75 // pred_fallthru
          _
      $region76: #{decoder_c_fused.1} parent=5 // pred_fallthru
        _
    $region6: #{decoder_c_fused.1} parent=1 // loop_footer
      %s27 = sadd.s32 1, %s23
    $region7: #{decoder_c_fused.1} parent=1 // loop_footer_branch
      %22 = sbr.rel target = $region3
    $region8: #{decoder_c_fused.1} parent=1 // loop_exit
      _
    %880 = vsyncpa [#allocation6], 1
    %s881 = scalar_lea.sflag [#allocation6], 1
    %882 = vsyncpa %s881, 1

</llo_original>
